<compile_context>
chip_gen: v7x
topology: tpu7x:2x2x1
jax: 0.10.0
libtpu: 0.0.40
codegen_flags: <defaults>
</compile_context>

<pallas_src>
import math

import jax
import jax.numpy as jnp
from jax.experimental import pallas as pl
from jax.experimental.pallas import tpu as pltpu


def resblock(x, w1, b1, w2, b2, *, res_scale=1.0):
    """x: (B, C, H, W) f32; w*: (C, C, K, K); b*: (C,)  ->  (B, C, H, W) f32."""
    B, C, H, W = x.shape
    Co, Ci, K, K2 = w1.shape
    assert Co == C and Ci == C and K == K2 and w2.shape == w1.shape
    p = K // 2
    Hi, Wi = H + 2 * p, W + 2 * p
    HWi = H * Wi                    # lane width of all compute / the output store
    L = (Hi + 1) * Wi               # padded+flattened image length (extra zero row keeps
                                    # every im2col slice in-bounds)
    KKC = K * K * C
    base = p * Wi + p               # flat offset of the first valid pixel in the padded layout

    # Batch blocking: nb images per grid step; keep >= 2 steps when B >= 2 (v7x has 2 TCs).
    if B >= 2:
        nb = max(d for d in range(1, B // 2 + 1) if B % d == 0)
    else:
        nb = 1
    G = B // nb

    # ---- wrapper-side (hoisted) layout work: flatten input, reshuffle weights ----
    # (pure reshape of contiguous trailing dims; no padding / no extra HBM copy)
    x_flat = x.astype(jnp.float32).reshape(B, C, H * W)

    # W[o, i, dy, dx] -> W_flat[o, (dy*K + dx)*C + i]  (matches im2col slice order).
    # res_scale folded into conv2's weight & bias; MXU operands pre-cast to bf16.
    w1f = jnp.transpose(w1, (0, 2, 3, 1)).reshape(C, KKC).astype(jnp.bfloat16)
    w2f = (jnp.transpose(w2, (0, 2, 3, 1)).reshape(C, KKC).astype(jnp.float32)
           * jnp.float32(res_scale)).astype(jnp.bfloat16)
    b1c = b1.reshape(C, 1).astype(jnp.float32)
    b2c = (b2.astype(jnp.float32) * jnp.float32(res_scale)).reshape(C, 1)

    # 1.0 for valid columns (w' < W within each Wi-wide row), 0.0 for junk columns.
    # Load-bearing: the zeroed junk columns become conv2's horizontal zero padding.
    col_mask = (jnp.arange(HWi) % Wi < W).astype(jnp.float32).reshape(1, HWi)

    # --------------------------------- kernel ----------------------------------
    def kernel(x_ref, w1_ref, b1_ref, w2_ref, b2_ref, mask_ref, o_ref, pad_ref):
        mask = mask_ref[...]                                   # (1, HWi) f32

        def conv(src_f32, wf, bias):
            # im2col: K*K contiguous flat slices stacked on the contraction axis,
            # then ONE MXU matmul (C, K*K*C)bf16 @ (K*K*C, H*Wi)bf16 -> f32.
            cols = jnp.concatenate(
                [src_f32[:, dy * Wi + dx: dy * Wi + dx + HWi]
                 for dy in range(K) for dx in range(K)],
                axis=0)                                        # (K*K*C, H*Wi) f32
            return jnp.dot(wf, cols.astype(jnp.bfloat16),
                           preferred_element_type=jnp.float32) + bias

        for n in range(nb):                                    # static unrolled loop
            # -- build the zero-padded flat image in pad_ref (rows + padding strips) --
            pad_ref[:, 0:base] = jnp.zeros((C, base), jnp.float32)       # top strip
            for h in range(H):
                lo = base + h * Wi
                pad_ref[:, lo:lo + W] = x_ref[n, :, h * W:(h + 1) * W]   # data row
                hi = lo + Wi if h < H - 1 else L
                pad_ref[:, lo + W:hi] = jnp.zeros((C, hi - lo - W), jnp.float32)

            src1 = pad_ref[...]                                # (C, L) f32, padded image

            # conv1 + bias + ReLU; zero junk columns (they become conv2's zero padding).
            z = jnp.maximum(conv(src1, w1_ref[...], b1_ref[...]), 0.0) * mask
            x_id = src1[:, base:base + HWi]                    # residual, same layout (f32)

            # Re-pad for conv2: overwrite only the H*Wi window; the zero strips outside
            # the window persist from the input-padding build above (no re-zeroing).
            pad_ref[:, base:base + HWi] = z

            # conv2 (res_scale already folded into w2/b2) + residual; one lane-dense store.
            res = conv(pad_ref[...], w2_ref[...], b2_ref[...])
            o_ref[n] = res + x_id

    out_flat = pl.pallas_call(
        kernel,
        out_shape=jax.ShapeDtypeStruct((B, C, HWi), jnp.float32),
        grid=(G,),
        in_specs=[
            pl.BlockSpec((nb, C, H * W), lambda g: (g, 0, 0)),  # raw per-image slab(s)
            pl.BlockSpec((C, KKC), lambda g: (0, 0)),           # conv1 weight (const, bf16)
            pl.BlockSpec((C, 1), lambda g: (0, 0)),             # conv1 bias
            pl.BlockSpec((C, KKC), lambda g: (0, 0)),           # conv2 weight*scale (const)
            pl.BlockSpec((C, 1), lambda g: (0, 0)),             # conv2 bias*scale
            pl.BlockSpec((1, HWi), lambda g: (0, 0)),           # valid-column mask
        ],
        out_specs=pl.BlockSpec((nb, C, HWi), lambda g: (g, 0, 0)),
        scratch_shapes=[pltpu.VMEM((C, L), jnp.float32)],        # shared pad scratch
        compiler_params=pltpu.CompilerParams(
            dimension_semantics=("parallel",)),
    )(x_flat, w1f, b1c, w2f, b2c, col_mask)

    # Strip the Wi -> W junk columns and restore NCHW (layout plumbing only).
    return out_flat.reshape(B, C, H, Wi)[:, :, :, :W]


def _reference(x, w1, b1, w2, b2, res_scale):
    # Pure-JAX mirror of the PyTorch forward, for correctness checking.
    dn = ("NCHW", "OIHW", "NCHW")
    prec = jax.lax.Precision.HIGHEST
    y = jax.lax.conv_general_dilated(x, w1, (1, 1), "SAME",
                                     dimension_numbers=dn, precision=prec)
    y = jax.nn.relu(y + b1[None, :, None, None])
    y = jax.lax.conv_general_dilated(y, w2, (1, 1), "SAME",
                                     dimension_numbers=dn, precision=prec)
    y = y + b2[None, :, None, None]
    return y * res_scale + x


if __name__ == "__main__":
    B, C, H, W, K = 2, 8, 16, 16, 3
    res_scale = 0.1

    key = jax.random.PRNGKey(0)
    ks = jax.random.split(key, 5)

    x = jax.random.normal(ks[0], (B, C, H, W), jnp.float32)
    fan_in = C * K * K
    w1 = jax.random.normal(ks[1], (C, C, K, K), jnp.float32) / math.sqrt(fan_in)
    b1 = jax.random.normal(ks[2], (C,), jnp.float32) * 0.1
    w2 = jax.random.normal(ks[3], (C, C, K, K), jnp.float32) / math.sqrt(fan_in)
    b2 = jax.random.normal(ks[4], (C,), jnp.float32) * 0.1

    out = resblock(x, w1, b1, w2, b2, res_scale=res_scale)
    out = jax.block_until_ready(out)

    ref = _reference(x, w1, b1, w2, b2, res_scale)
    assert out.shape == (B, C, H, W)
    # Tolerance relaxed vs. pure-f32 (1e-3) because the MXU operands are bf16
    # (f32 accumulation); observed error is ~1e-3, bound set at 1e-2 for headroom.
    assert jnp.allclose(out, ref, atol=1e-2, rtol=1e-2), "mismatch vs reference"

    print("KERNEL_OK")
</pallas_src>

<mosaic_0001>
module attributes {stable_mosaic.version = 11 : i64} {
  func.func @kernel(%arg0: i32, %arg1: memref<1x8x256xf32, #tpu.memory_space<vmem>>, %arg2: memref<8x72xbf16, #tpu.memory_space<vmem>>, %arg3: memref<8x1xf32, #tpu.memory_space<vmem>>, %arg4: memref<8x72xbf16, #tpu.memory_space<vmem>>, %arg5: memref<8x1xf32, #tpu.memory_space<vmem>>, %arg6: memref<1x288xf32, #tpu.memory_space<vmem>>, %arg7: memref<1x8x288xf32, #tpu.memory_space<vmem>>, %arg8: memref<8x342xf32, #tpu.memory_space<vmem>>) attributes {dimension_semantics = [#tpu.dimension_semantics<parallel>], iteration_bounds = array<i64: 2>, scalar_prefetch = 0 : i64, scratch_operands = 1 : i64, tpu.core_type = #tpu.core_type<tc>, window_params = [{transform_indices = @transform_0, window_bounds = array<i64: 1, 8, 256>}, {pipeline_mode = #tpu.pipeline_mode<synchronous>, transform_indices = @transform_1, window_bounds = array<i64: 8, 72>}, {pipeline_mode = #tpu.pipeline_mode<synchronous>, transform_indices = @transform_2, window_bounds = array<i64: 8, 1>}, {pipeline_mode = #tpu.pipeline_mode<synchronous>, transform_indices = @transform_3, window_bounds = array<i64: 8, 72>}, {pipeline_mode = #tpu.pipeline_mode<synchronous>, transform_indices = @transform_4, window_bounds = array<i64: 8, 1>}, {pipeline_mode = #tpu.pipeline_mode<synchronous>, transform_indices = @transform_5, window_bounds = array<i64: 1, 288>}, {transform_indices = @transform_6, window_bounds = array<i64: 1, 8, 288>}]} {
    %c0 = arith.constant 0 : index
    %c0_0 = arith.constant 0 : index
    %0 = vector.load %arg6[%c0, %c0_0] : memref<1x288xf32, #tpu.memory_space<vmem>>, vector<1x288xf32>
    %cst = arith.constant 0.000000e+00 : f32
    %1 = vector.broadcast %cst : f32 to vector<8x19xf32>
    %c0_1 = arith.constant 0 : index
    %c0_2 = arith.constant 0 : index
    %2 = vector.load %arg8[%c0_1, %c0_2] : memref<8x342xf32, #tpu.memory_space<vmem>>, vector<8x19xf32>
    tpu.vector_store %arg8[%c0_1, %c0_2], %1 {strides = array<i32>} : memref<8x342xf32, #tpu.memory_space<vmem>>, vector<8x19xf32>,
    %c0_3 = arith.constant 0 : index
    %c0_4 = arith.constant 0 : index
    %c0_5 = arith.constant 0 : index
    %3 = vector.load %arg1[%c0_3, %c0_4, %c0_5] : memref<1x8x256xf32, #tpu.memory_space<vmem>>, vector<1x8x16xf32>
    %4 = vector.shape_cast %3 : vector<1x8x16xf32> to vector<8x16xf32>
    %c0_6 = arith.constant 0 : index
    %c19 = arith.constant 19 : index
    %5 = vector.load %arg8[%c0_6, %c19] : memref<8x342xf32, #tpu.memory_space<vmem>>, vector<8x16xf32>
    tpu.vector_store %arg8[%c0_6, %c19], %4 {strides = array<i32>} : memref<8x342xf32, #tpu.memory_space<vmem>>, vector<8x16xf32>,
    %cst_7 = arith.constant 0.000000e+00 : f32
    %6 = vector.broadcast %cst_7 : f32 to vector<8x2xf32>
    %c0_8 = arith.constant 0 : index
    %c35 = arith.constant 35 : index
    %7 = vector.load %arg8[%c0_8, %c35] : memref<8x342xf32, #tpu.memory_space<vmem>>, vector<8x2xf32>
    tpu.vector_store %arg8[%c0_8, %c35], %6 {strides = array<i32>} : memref<8x342xf32, #tpu.memory_space<vmem>>, vector<8x2xf32>,
    %c0_9 = arith.constant 0 : index
    %c0_10 = arith.constant 0 : index
    %c16 = arith.constant 16 : index
    %8 = vector.load %arg1[%c0_9, %c0_10, %c16] : memref<1x8x256xf32, #tpu.memory_space<vmem>>, vector<1x8x16xf32>
    %9 = vector.shape_cast %8 : vector<1x8x16xf32> to vector<8x16xf32>
    %c0_11 = arith.constant 0 : index
    %c37 = arith.constant 37 : index
    %10 = vector.load %arg8[%c0_11, %c37] : memref<8x342xf32, #tpu.memory_space<vmem>>, vector<8x16xf32>
    tpu.vector_store %arg8[%c0_11, %c37], %9 {strides = array<i32>} : memref<8x342xf32, #tpu.memory_space<vmem>>, vector<8x16xf32>,
    %cst_12 = arith.constant 0.000000e+00 : f32
    %11 = vector.broadcast %cst_12 : f32 to vector<8x2xf32>
    %c0_13 = arith.constant 0 : index
    %c53 = arith.constant 53 : index
    %12 = vector.load %arg8[%c0_13, %c53] : memref<8x342xf32, #tpu.memory_space<vmem>>, vector<8x2xf32>
    tpu.vector_store %arg8[%c0_13, %c53], %11 {strides = array<i32>} : memref<8x342xf32, #tpu.memory_space<vmem>>, vector<8x2xf32>,
    %c0_14 = arith.constant 0 : index
    %c0_15 = arith.constant 0 : index
    %c32 = arith.constant 32 : index
    %13 = vector.load %arg1[%c0_14, %c0_15, %c32] : memref<1x8x256xf32, #tpu.memory_space<vmem>>, vector<1x8x16xf32>
    %14 = vector.shape_cast %13 : vector<1x8x16xf32> to vector<8x16xf32>
    %c0_16 = arith.constant 0 : index
    %c55 = arith.constant 55 : index
    %15 = vector.load %arg8[%c0_16, %c55] : memref<8x342xf32, #tpu.memory_space<vmem>>, vector<8x16xf32>
    tpu.vector_store %arg8[%c0_16, %c55], %14 {strides = array<i32>} : memref<8x342xf32, #tpu.memory_space<vmem>>, vector<8x16xf32>,
    %cst_17 = arith.constant 0.000000e+00 : f32
    %16 = vector.broadcast %cst_17 : f32 to vector<8x2xf32>
    %c0_18 = arith.constant 0 : index
    %c71 = arith.constant 71 : index
    %17 = vector.load %arg8[%c0_18, %c71] : memref<8x342xf32, #tpu.memory_space<vmem>>, vector<8x2xf32>
    tpu.vector_store %arg8[%c0_18, %c71], %16 {strides = array<i32>} : memref<8x342xf32, #tpu.memory_space<vmem>>, vector<8x2xf32>,
    %c0_19 = arith.constant 0 : index
    %c0_20 = arith.constant 0 : index
    %c48 = arith.constant 48 : index
    %18 = vector.load %arg1[%c0_19, %c0_20, %c48] : memref<1x8x256xf32, #tpu.memory_space<vmem>>, vector<1x8x16xf32>
    %19 = vector.shape_cast %18 : vector<1x8x16xf32> to vector<8x16xf32>
    %c0_21 = arith.constant 0 : index
    %c73 = arith.constant 73 : index
    %20 = vector.load %arg8[%c0_21, %c73] : memref<8x342xf32, #tpu.memory_space<vmem>>, vector<8x16xf32>
    tpu.vector_store %arg8[%c0_21, %c73], %19 {strides = array<i32>} : memref<8x342xf32, #tpu.memory_space<vmem>>, vector<8x16xf32>,
    %cst_22 = arith.constant 0.000000e+00 : f32
    %21 = vector.broadcast %cst_22 : f32 to vector<8x2xf32>
    %c0_23 = arith.constant 0 : index
    %c89 = arith.constant 89 : index
    %22 = vector.load %arg8[%c0_23, %c89] : memref<8x342xf32, #tpu.memory_space<vmem>>, vector<8x2xf32>
    tpu.vector_store %arg8[%c0_23, %c89], %21 {strides = array<i32>} : memref<8x342xf32, #tpu.memory_space<vmem>>, vector<8x2xf32>,
    %c0_24 = arith.constant 0 : index
    %c0_25 = arith.constant 0 : index
    %c64 = arith.constant 64 : index
    %23 = vector.load %arg1[%c0_24, %c0_25, %c64] : memref<1x8x256xf32, #tpu.memory_space<vmem>>, vector<1x8x16xf32>
    %24 = vector.shape_cast %23 : vector<1x8x16xf32> to vector<8x16xf32>
    %c0_26 = arith.constant 0 : index
    %c91 = arith.constant 91 : index
    %25 = vector.load %arg8[%c0_26, %c91] : memref<8x342xf32, #tpu.memory_space<vmem>>, vector<8x16xf32>
    tpu.vector_store %arg8[%c0_26, %c91], %24 {strides = array<i32>} : memref<8x342xf32, #tpu.memory_space<vmem>>, vector<8x16xf32>,
    %cst_27 = arith.constant 0.000000e+00 : f32
    %26 = vector.broadcast %cst_27 : f32 to vector<8x2xf32>
    %c0_28 = arith.constant 0 : index
    %c107 = arith.constant 107 : index
    %27 = vector.load %arg8[%c0_28, %c107] : memref<8x342xf32, #tpu.memory_space<vmem>>, vector<8x2xf32>
    tpu.vector_store %arg8[%c0_28, %c107], %26 {strides = array<i32>} : memref<8x342xf32, #tpu.memory_space<vmem>>, vector<8x2xf32>,
    %c0_29 = arith.constant 0 : index
    %c0_30 = arith.constant 0 : index
    %c80 = arith.constant 80 : index
    %28 = vector.load %arg1[%c0_29, %c0_30, %c80] : memref<1x8x256xf32, #tpu.memory_space<vmem>>, vector<1x8x16xf32>
    %29 = vector.shape_cast %28 : vector<1x8x16xf32> to vector<8x16xf32>
    %c0_31 = arith.constant 0 : index
    %c109 = arith.constant 109 : index
    %30 = vector.load %arg8[%c0_31, %c109] : memref<8x342xf32, #tpu.memory_space<vmem>>, vector<8x16xf32>
    tpu.vector_store %arg8[%c0_31, %c109], %29 {strides = array<i32>} : memref<8x342xf32, #tpu.memory_space<vmem>>, vector<8x16xf32>,
    %cst_32 = arith.constant 0.000000e+00 : f32
    %31 = vector.broadcast %cst_32 : f32 to vector<8x2xf32>
    %c0_33 = arith.constant 0 : index
    %c125 = arith.constant 125 : index
    %32 = vector.load %arg8[%c0_33, %c125] : memref<8x342xf32, #tpu.memory_space<vmem>>, vector<8x2xf32>
    tpu.vector_store %arg8[%c0_33, %c125], %31 {strides = array<i32>} : memref<8x342xf32, #tpu.memory_space<vmem>>, vector<8x2xf32>,
    %c0_34 = arith.constant 0 : index
    %c0_35 = arith.constant 0 : index
    %c96 = arith.constant 96 : index
    %33 = vector.load %arg1[%c0_34, %c0_35, %c96] : memref<1x8x256xf32, #tpu.memory_space<vmem>>, vector<1x8x16xf32>
    %34 = vector.shape_cast %33 : vector<1x8x16xf32> to vector<8x16xf32>
    %c0_36 = arith.constant 0 : index
    %c127 = arith.constant 127 : index
    %35 = vector.load %arg8[%c0_36, %c127] : memref<8x342xf32, #tpu.memory_space<vmem>>, vector<8x16xf32>
    tpu.vector_store %arg8[%c0_36, %c127], %34 {strides = array<i32>} : memref<8x342xf32, #tpu.memory_space<vmem>>, vector<8x16xf32>,
    %cst_37 = arith.constant 0.000000e+00 : f32
    %36 = vector.broadcast %cst_37 : f32 to vector<8x2xf32>
    %c0_38 = arith.constant 0 : index
    %c143 = arith.constant 143 : index
    %37 = vector.load %arg8[%c0_38, %c143] : memref<8x342xf32, #tpu.memory_space<vmem>>, vector<8x2xf32>
    tpu.vector_store %arg8[%c0_38, %c143], %36 {strides = array<i32>} : memref<8x342xf32, #tpu.memory_space<vmem>>, vector<8x2xf32>,
    %c0_39 = arith.constant 0 : index
    %c0_40 = arith.constant 0 : index
    %c112 = arith.constant 112 : index
    %38 = vector.load %arg1[%c0_39, %c0_40, %c112] : memref<1x8x256xf32, #tpu.memory_space<vmem>>, vector<1x8x16xf32>
    %39 = vector.shape_cast %38 : vector<1x8x16xf32> to vector<8x16xf32>
    %c0_41 = arith.constant 0 : index
    %c145 = arith.constant 145 : index
    %40 = vector.load %arg8[%c0_41, %c145] : memref<8x342xf32, #tpu.memory_space<vmem>>, vector<8x16xf32>
    tpu.vector_store %arg8[%c0_41, %c145], %39 {strides = array<i32>} : memref<8x342xf32, #tpu.memory_space<vmem>>, vector<8x16xf32>,
    %cst_42 = arith.constant 0.000000e+00 : f32
    %41 = vector.broadcast %cst_42 : f32 to vector<8x2xf32>
    %c0_43 = arith.constant 0 : index
    %c161 = arith.constant 161 : index
    %42 = vector.load %arg8[%c0_43, %c161] : memref<8x342xf32, #tpu.memory_space<vmem>>, vector<8x2xf32>
    tpu.vector_store %arg8[%c0_43, %c161], %41 {strides = array<i32>} : memref<8x342xf32, #tpu.memory_space<vmem>>, vector<8x2xf32>,
    %c0_44 = arith.constant 0 : index
    %c0_45 = arith.constant 0 : index
    %c128 = arith.constant 128 : index
    %43 = vector.load %arg1[%c0_44, %c0_45, %c128] : memref<1x8x256xf32, #tpu.memory_space<vmem>>, vector<1x8x16xf32>
    %44 = vector.shape_cast %43 : vector<1x8x16xf32> to vector<8x16xf32>
    %c0_46 = arith.constant 0 : index
    %c163 = arith.constant 163 : index
    %45 = vector.load %arg8[%c0_46, %c163] : memref<8x342xf32, #tpu.memory_space<vmem>>, vector<8x16xf32>
    tpu.vector_store %arg8[%c0_46, %c163], %44 {strides = array<i32>} : memref<8x342xf32, #tpu.memory_space<vmem>>, vector<8x16xf32>,
    %cst_47 = arith.constant 0.000000e+00 : f32
    %46 = vector.broadcast %cst_47 : f32 to vector<8x2xf32>
    %c0_48 = arith.constant 0 : index
    %c179 = arith.constant 179 : index
    %47 = vector.load %arg8[%c0_48, %c179] : memref<8x342xf32, #tpu.memory_space<vmem>>, vector<8x2xf32>
    tpu.vector_store %arg8[%c0_48, %c179], %46 {strides = array<i32>} : memref<8x342xf32, #tpu.memory_space<vmem>>, vector<8x2xf32>,
    %c0_49 = arith.constant 0 : index
    %c0_50 = arith.constant 0 : index
    %c144 = arith.constant 144 : index
    %48 = vector.load %arg1[%c0_49, %c0_50, %c144] : memref<1x8x256xf32, #tpu.memory_space<vmem>>, vector<1x8x16xf32>
    %49 = vector.shape_cast %48 : vector<1x8x16xf32> to vector<8x16xf32>
    %c0_51 = arith.constant 0 : index
    %c181 = arith.constant 181 : index
    %50 = vector.load %arg8[%c0_51, %c181] : memref<8x342xf32, #tpu.memory_space<vmem>>, vector<8x16xf32>
    tpu.vector_store %arg8[%c0_51, %c181], %49 {strides = array<i32>} : memref<8x342xf32, #tpu.memory_space<vmem>>, vector<8x16xf32>,
    %cst_52 = arith.constant 0.000000e+00 : f32
    %51 = vector.broadcast %cst_52 : f32 to vector<8x2xf32>
    %c0_53 = arith.constant 0 : index
    %c197 = arith.constant 197 : index
    %52 = vector.load %arg8[%c0_53, %c197] : memref<8x342xf32, #tpu.memory_space<vmem>>, vector<8x2xf32>
    tpu.vector_store %arg8[%c0_53, %c197], %51 {strides = array<i32>} : memref<8x342xf32, #tpu.memory_space<vmem>>, vector<8x2xf32>,
    %c0_54 = arith.constant 0 : index
    %c0_55 = arith.constant 0 : index
    %c160 = arith.constant 160 : index
    %53 = vector.load %arg1[%c0_54, %c0_55, %c160] : memref<1x8x256xf32, #tpu.memory_space<vmem>>, vector<1x8x16xf32>
    %54 = vector.shape_cast %53 : vector<1x8x16xf32> to vector<8x16xf32>
    %c0_56 = arith.constant 0 : index
    %c199 = arith.constant 199 : index
    %55 = vector.load %arg8[%c0_56, %c199] : memref<8x342xf32, #tpu.memory_space<vmem>>, vector<8x16xf32>
    tpu.vector_store %arg8[%c0_56, %c199], %54 {strides = array<i32>} : memref<8x342xf32, #tpu.memory_space<vmem>>, vector<8x16xf32>,
    %cst_57 = arith.constant 0.000000e+00 : f32
    %56 = vector.broadcast %cst_57 : f32 to vector<8x2xf32>
    %c0_58 = arith.constant 0 : index
    %c215 = arith.constant 215 : index
    %57 = vector.load %arg8[%c0_58, %c215] : memref<8x342xf32, #tpu.memory_space<vmem>>, vector<8x2xf32>
    tpu.vector_store %arg8[%c0_58, %c215], %56 {strides = array<i32>} : memref<8x342xf32, #tpu.memory_space<vmem>>, vector<8x2xf32>,
    %c0_59 = arith.constant 0 : index
    %c0_60 = arith.constant 0 : index
    %c176 = arith.constant 176 : index
    %58 = vector.load %arg1[%c0_59, %c0_60, %c176] : memref<1x8x256xf32, #tpu.memory_space<vmem>>, vector<1x8x16xf32>
    %59 = vector.shape_cast %58 : vector<1x8x16xf32> to vector<8x16xf32>
    %c0_61 = arith.constant 0 : index
    %c217 = arith.constant 217 : index
    %60 = vector.load %arg8[%c0_61, %c217] : memref<8x342xf32, #tpu.memory_space<vmem>>, vector<8x16xf32>
    tpu.vector_store %arg8[%c0_61, %c217], %59 {strides = array<i32>} : memref<8x342xf32, #tpu.memory_space<vmem>>, vector<8x16xf32>,
    %cst_62 = arith.constant 0.000000e+00 : f32
    %61 = vector.broadcast %cst_62 : f32 to vector<8x2xf32>
    %c0_63 = arith.constant 0 : index
    %c233 = arith.constant 233 : index
    %62 = vector.load %arg8[%c0_63, %c233] : memref<8x342xf32, #tpu.memory_space<vmem>>, vector<8x2xf32>
    tpu.vector_store %arg8[%c0_63, %c233], %61 {strides = array<i32>} : memref<8x342xf32, #tpu.memory_space<vmem>>, vector<8x2xf32>,
    %c0_64 = arith.constant 0 : index
    %c0_65 = arith.constant 0 : index
    %c192 = arith.constant 192 : index
    %63 = vector.load %arg1[%c0_64, %c0_65, %c192] : memref<1x8x256xf32, #tpu.memory_space<vmem>>, vector<1x8x16xf32>
    %64 = vector.shape_cast %63 : vector<1x8x16xf32> to vector<8x16xf32>
    %c0_66 = arith.constant 0 : index
    %c235 = arith.constant 235 : index
    %65 = vector.load %arg8[%c0_66, %c235] : memref<8x342xf32, #tpu.memory_space<vmem>>, vector<8x16xf32>
    tpu.vector_store %arg8[%c0_66, %c235], %64 {strides = array<i32>} : memref<8x342xf32, #tpu.memory_space<vmem>>, vector<8x16xf32>,
    %cst_67 = arith.constant 0.000000e+00 : f32
    %66 = vector.broadcast %cst_67 : f32 to vector<8x2xf32>
    %c0_68 = arith.constant 0 : index
    %c251 = arith.constant 251 : index
    %67 = vector.load %arg8[%c0_68, %c251] : memref<8x342xf32, #tpu.memory_space<vmem>>, vector<8x2xf32>
    tpu.vector_store %arg8[%c0_68, %c251], %66 {strides = array<i32>} : memref<8x342xf32, #tpu.memory_space<vmem>>, vector<8x2xf32>,
    %c0_69 = arith.constant 0 : index
    %c0_70 = arith.constant 0 : index
    %c208 = arith.constant 208 : index
    %68 = vector.load %arg1[%c0_69, %c0_70, %c208] : memref<1x8x256xf32, #tpu.memory_space<vmem>>, vector<1x8x16xf32>
    %69 = vector.shape_cast %68 : vector<1x8x16xf32> to vector<8x16xf32>
    %c0_71 = arith.constant 0 : index
    %c253 = arith.constant 253 : index
    %70 = vector.load %arg8[%c0_71, %c253] : memref<8x342xf32, #tpu.memory_space<vmem>>, vector<8x16xf32>
    tpu.vector_store %arg8[%c0_71, %c253], %69 {strides = array<i32>} : memref<8x342xf32, #tpu.memory_space<vmem>>, vector<8x16xf32>,
    %cst_72 = arith.constant 0.000000e+00 : f32
    %71 = vector.broadcast %cst_72 : f32 to vector<8x2xf32>
    %c0_73 = arith.constant 0 : index
    %c269 = arith.constant 269 : index
    %72 = vector.load %arg8[%c0_73, %c269] : memref<8x342xf32, #tpu.memory_space<vmem>>, vector<8x2xf32>
    tpu.vector_store %arg8[%c0_73, %c269], %71 {strides = array<i32>} : memref<8x342xf32, #tpu.memory_space<vmem>>, vector<8x2xf32>,
    %c0_74 = arith.constant 0 : index
    %c0_75 = arith.constant 0 : index
    %c224 = arith.constant 224 : index
    %73 = vector.load %arg1[%c0_74, %c0_75, %c224] : memref<1x8x256xf32, #tpu.memory_space<vmem>>, vector<1x8x16xf32>
    %74 = vector.shape_cast %73 : vector<1x8x16xf32> to vector<8x16xf32>
    %c0_76 = arith.constant 0 : index
    %c271 = arith.constant 271 : index
    %75 = vector.load %arg8[%c0_76, %c271] : memref<8x342xf32, #tpu.memory_space<vmem>>, vector<8x16xf32>
    tpu.vector_store %arg8[%c0_76, %c271], %74 {strides = array<i32>} : memref<8x342xf32, #tpu.memory_space<vmem>>, vector<8x16xf32>,
    %cst_77 = arith.constant 0.000000e+00 : f32
    %76 = vector.broadcast %cst_77 : f32 to vector<8x2xf32>
    %c0_78 = arith.constant 0 : index
    %c287 = arith.constant 287 : index
    %77 = vector.load %arg8[%c0_78, %c287] : memref<8x342xf32, #tpu.memory_space<vmem>>, vector<8x2xf32>
    tpu.vector_store %arg8[%c0_78, %c287], %76 {strides = array<i32>} : memref<8x342xf32, #tpu.memory_space<vmem>>, vector<8x2xf32>,
    %c0_79 = arith.constant 0 : index
    %c0_80 = arith.constant 0 : index
    %c240 = arith.constant 240 : index
    %78 = vector.load %arg1[%c0_79, %c0_80, %c240] : memref<1x8x256xf32, #tpu.memory_space<vmem>>, vector<1x8x16xf32>
    %79 = vector.shape_cast %78 : vector<1x8x16xf32> to vector<8x16xf32>
    %c0_81 = arith.constant 0 : index
    %c289 = arith.constant 289 : index
    %80 = vector.load %arg8[%c0_81, %c289] : memref<8x342xf32, #tpu.memory_space<vmem>>, vector<8x16xf32>
    tpu.vector_store %arg8[%c0_81, %c289], %79 {strides = array<i32>} : memref<8x342xf32, #tpu.memory_space<vmem>>, vector<8x16xf32>,
    %cst_82 = arith.constant 0.000000e+00 : f32
    %81 = vector.broadcast %cst_82 : f32 to vector<8x37xf32>
    %c0_83 = arith.constant 0 : index
    %c305 = arith.constant 305 : index
    %82 = vector.load %arg8[%c0_83, %c305] : memref<8x342xf32, #tpu.memory_space<vmem>>, vector<8x37xf32>
    tpu.vector_store %arg8[%c0_83, %c305], %81 {strides = array<i32>} : memref<8x342xf32, #tpu.memory_space<vmem>>, vector<8x37xf32>,
    %c0_84 = arith.constant 0 : index
    %c0_85 = arith.constant 0 : index
    %83 = vector.load %arg8[%c0_84, %c0_85] : memref<8x342xf32, #tpu.memory_space<vmem>>, vector<8x342xf32>
    %c0_86 = arith.constant 0 : index
    %c0_87 = arith.constant 0 : index
    %84 = vector.load %arg2[%c0_86, %c0_87] : memref<8x72xbf16, #tpu.memory_space<vmem>>, vector<8x72xbf16>
    %c0_88 = arith.constant 0 : index
    %c0_89 = arith.constant 0 : index
    %85 = vector.load %arg3[%c0_88, %c0_89] : memref<8x1xf32, #tpu.memory_space<vmem>>, vector<8x1xf32>
    %86 = vector.extract_strided_slice %83 {offsets = [0, 0], sizes = [8, 288], strides = [1, 1]} : vector<8x342xf32> to vector<8x288xf32>
    %87 = vector.extract_strided_slice %83 {offsets = [0, 1], sizes = [8, 288], strides = [1, 1]} : vector<8x342xf32> to vector<8x288xf32>
    %88 = vector.extract_strided_slice %83 {offsets = [0, 2], sizes = [8, 288], strides = [1, 1]} : vector<8x342xf32> to vector<8x288xf32>
    %89 = vector.extract_strided_slice %83 {offsets = [0, 18], sizes = [8, 288], strides = [1, 1]} : vector<8x342xf32> to vector<8x288xf32>
    %90 = vector.extract_strided_slice %83 {offsets = [0, 19], sizes = [8, 288], strides = [1, 1]} : vector<8x342xf32> to vector<8x288xf32>
    %91 = vector.extract_strided_slice %83 {offsets = [0, 20], sizes = [8, 288], strides = [1, 1]} : vector<8x342xf32> to vector<8x288xf32>
    %92 = vector.extract_strided_slice %83 {offsets = [0, 36], sizes = [8, 288], strides = [1, 1]} : vector<8x342xf32> to vector<8x288xf32>
    %93 = vector.extract_strided_slice %83 {offsets = [0, 37], sizes = [8, 288], strides = [1, 1]} : vector<8x342xf32> to vector<8x288xf32>
    %94 = vector.extract_strided_slice %83 {offsets = [0, 38], sizes = [8, 288], strides = [1, 1]} : vector<8x342xf32> to vector<8x288xf32>
    %95 = tpu.concatenate %86, %87, %88, %89, %90, %91, %92, %93, %94 in 0 : vector<8x288xf32>, vector<8x288xf32>, vector<8x288xf32>, vector<8x288xf32>, vector<8x288xf32>, vector<8x288xf32>, vector<8x288xf32>, vector<8x288xf32>, vector<8x288xf32> -> vector<72x288xf32>
    %96 = arith.truncf %95 : vector<72x288xf32> to vector<72x288xbf16>
    %cst_90 = arith.constant dense<0.000000e+00> : vector<8x288xf32>
    %97 = tpu.matmul %84, %96, %cst_90 {dimension_numbers = #tpu.dot_dimension_numbers<[1], [0], [0], [1], [0, 0, 1, 1], [], []>} : vector<8x72xbf16>, vector<72x288xbf16>, vector<8x288xf32> -> vector<8x288xf32>
    %98 = vector.broadcast %85 : vector<8x1xf32> to vector<8x288xf32>
    %99 = arith.addf %97, %98 : vector<8x288xf32>
    %cst_91 = arith.constant 0.000000e+00 : f32
    %100 = vector.broadcast %cst_91 : f32 to vector<8x288xf32>
    %101 = arith.maximumf %99, %100 : vector<8x288xf32>
    %102 = vector.broadcast %0 : vector<1x288xf32> to vector<8x288xf32>
    %103 = arith.mulf %101, %102 : vector<8x288xf32>
    %104 = vector.extract_strided_slice %83 {offsets = [0, 19], sizes = [8, 288], strides = [1, 1]} : vector<8x342xf32> to vector<8x288xf32>
    %c0_92 = arith.constant 0 : index
    %c19_93 = arith.constant 19 : index
    %105 = vector.load %arg8[%c0_92, %c19_93] : memref<8x342xf32, #tpu.memory_space<vmem>>, vector<8x288xf32>
    tpu.vector_store %arg8[%c0_92, %c19_93], %103 {strides = array<i32>} : memref<8x342xf32, #tpu.memory_space<vmem>>, vector<8x288xf32>,
    %c0_94 = arith.constant 0 : index
    %c0_95 = arith.constant 0 : index
    %106 = vector.load %arg8[%c0_94, %c0_95] : memref<8x342xf32, #tpu.memory_space<vmem>>, vector<8x342xf32>
    %c0_96 = arith.constant 0 : index
    %c0_97 = arith.constant 0 : index
    %107 = vector.load %arg4[%c0_96, %c0_97] : memref<8x72xbf16, #tpu.memory_space<vmem>>, vector<8x72xbf16>
    %c0_98 = arith.constant 0 : index
    %c0_99 = arith.constant 0 : index
    %108 = vector.load %arg5[%c0_98, %c0_99] : memref<8x1xf32, #tpu.memory_space<vmem>>, vector<8x1xf32>
    %109 = vector.extract_strided_slice %106 {offsets = [0, 0], sizes = [8, 288], strides = [1, 1]} : vector<8x342xf32> to vector<8x288xf32>
    %110 = vector.extract_strided_slice %106 {offsets = [0, 1], sizes = [8, 288], strides = [1, 1]} : vector<8x342xf32> to vector<8x288xf32>
    %111 = vector.extract_strided_slice %106 {offsets = [0, 2], sizes = [8, 288], strides = [1, 1]} : vector<8x342xf32> to vector<8x288xf32>
    %112 = vector.extract_strided_slice %106 {offsets = [0, 18], sizes = [8, 288], strides = [1, 1]} : vector<8x342xf32> to vector<8x288xf32>
    %113 = vector.extract_strided_slice %106 {offsets = [0, 19], sizes = [8, 288], strides = [1, 1]} : vector<8x342xf32> to vector<8x288xf32>
    %114 = vector.extract_strided_slice %106 {offsets = [0, 20], sizes = [8, 288], strides = [1, 1]} : vector<8x342xf32> to vector<8x288xf32>
    %115 = vector.extract_strided_slice %106 {offsets = [0, 36], sizes = [8, 288], strides = [1, 1]} : vector<8x342xf32> to vector<8x288xf32>
    %116 = vector.extract_strided_slice %106 {offsets = [0, 37], sizes = [8, 288], strides = [1, 1]} : vector<8x342xf32> to vector<8x288xf32>
    %117 = vector.extract_strided_slice %106 {offsets = [0, 38], sizes = [8, 288], strides = [1, 1]} : vector<8x342xf32> to vector<8x288xf32>
    %118 = tpu.concatenate %109, %110, %111, %112, %113, %114, %115, %116, %117 in 0 : vector<8x288xf32>, vector<8x288xf32>, vector<8x288xf32>, vector<8x288xf32>, vector<8x288xf32>, vector<8x288xf32>, vector<8x288xf32>, vector<8x288xf32>, vector<8x288xf32> -> vector<72x288xf32>
    %119 = arith.truncf %118 : vector<72x288xf32> to vector<72x288xbf16>
    %cst_100 = arith.constant dense<0.000000e+00> : vector<8x288xf32>
    %120 = tpu.matmul %107, %119, %cst_100 {dimension_numbers = #tpu.dot_dimension_numbers<[1], [0], [0], [1], [0, 0, 1, 1], [], []>} : vector<8x72xbf16>, vector<72x288xbf16>, vector<8x288xf32> -> vector<8x288xf32>
    %121 = vector.broadcast %108 : vector<8x1xf32> to vector<8x288xf32>
    %122 = arith.addf %120, %121 : vector<8x288xf32>
    %123 = arith.addf %122, %104 : vector<8x288xf32>
    %c0_101 = arith.constant 0 : index
    %c0_102 = arith.constant 0 : index
    %c0_103 = arith.constant 0 : index
    %124 = vector.load %arg7[%c0_101, %c0_102, %c0_103] : memref<1x8x288xf32, #tpu.memory_space<vmem>>, vector<1x8x288xf32>
    %125 = vector.shape_cast %124 : vector<1x8x288xf32> to vector<8x288xf32>
    %126 = vector.shape_cast %123 : vector<8x288xf32> to vector<1x8x288xf32>
    tpu.vector_store %arg7[%c0_101, %c0_102, %c0_103], %126 {strides = array<i32>} : memref<1x8x288xf32, #tpu.memory_space<vmem>>, vector<1x8x288xf32>,
    return
  }
  func.func @transform_0(%arg0: i32) -> (i32, i32, i32) {
    %c0_i32 = arith.constant 0 : i32
    %c0_i32_0 = arith.constant 0 : i32
    %c0_i32_1 = arith.constant 0 : i32
    return %arg0, %c0_i32, %c0_i32_0 : i32, i32, i32
  }
  func.func @transform_1(%arg0: i32) -> (i32, i32) {
    %c0_i32 = arith.constant 0 : i32
    %c0_i32_0 = arith.constant 0 : i32
    %c0_i32_1 = arith.constant 0 : i32
    return %c0_i32, %c0_i32_0 : i32, i32
  }
  func.func @transform_2(%arg0: i32) -> (i32, i32) {
    %c0_i32 = arith.constant 0 : i32
    %c0_i32_0 = arith.constant 0 : i32
    %c0_i32_1 = arith.constant 0 : i32
    return %c0_i32, %c0_i32_0 : i32, i32
  }
  func.func @transform_3(%arg0: i32) -> (i32, i32) {
    %c0_i32 = arith.constant 0 : i32
    %c0_i32_0 = arith.constant 0 : i32
    %c0_i32_1 = arith.constant 0 : i32
    return %c0_i32, %c0_i32_0 : i32, i32
  }
  func.func @transform_4(%arg0: i32) -> (i32, i32) {
    %c0_i32 = arith.constant 0 : i32
    %c0_i32_0 = arith.constant 0 : i32
    %c0_i32_1 = arith.constant 0 : i32
    return %c0_i32, %c0_i32_0 : i32, i32
  }
  func.func @transform_5(%arg0: i32) -> (i32, i32) {
    %c0_i32 = arith.constant 0 : i32
    %c0_i32_0 = arith.constant 0 : i32
    %c0_i32_1 = arith.constant 0 : i32
    return %c0_i32, %c0_i32_0 : i32, i32
  }
  func.func @transform_6(%arg0: i32) -> (i32, i32, i32) {
    %c0_i32 = arith.constant 0 : i32
    %c0_i32_0 = arith.constant 0 : i32
    %c0_i32_1 = arith.constant 0 : i32
    return %arg0, %c0_i32, %c0_i32_0 : i32, i32, i32
  }
}

</mosaic_0001>

<llo_original>
// kernel: tpu_custom_call.1
$region0: #{tpu_custom_call.1}
  #allocation0 [shape = 'u32[]', space=smem, size = 0x4, offset = 0x4, fixed_abs, tag = 'smem constant byte address 0x4 - core index']
  #allocation1 [shape = 'u32[144,128]{1,0:T(1,128)}', space=vmem, size = 0x12000, scoped, tag = 'internal scratch']
  #allocation2 [shape = 'f32[8,342]{1,0:T(8,128)}', space=vmem, size = 0x3000, scoped, tag = 'scratch operand']
  %s0 = inlined_call_operand.hbm [shape: f32[2,8,256], index: 0, kind: input, shape index: {}]
  %s1 = inlined_call_operand.vmem [shape: bf16[8,72], index: 1, kind: input, shape index: {}]
  %s2 = inlined_call_operand.vmem [shape: f32[8,1], index: 2, kind: input, shape index: {}]
  %s3 = inlined_call_operand.vmem [shape: bf16[8,72], index: 3, kind: input, shape index: {}]
  %s4 = inlined_call_operand.vmem [shape: f32[8,1], index: 4, kind: input, shape index: {}]
  %s5 = inlined_call_operand.vmem [shape: f32[1,288], index: 5, kind: input, shape index: {}]
  %s6 = inlined_call_operand.hbm [shape: f32[2,8,288], index: 6, kind: output, shape index: {}]
  %s7 = sld [smem:[#allocation0]]
  $region61: #{tpu_custom_call.1} parent=0
    _
  %s9 = ssub.s32 1, %s7
  %s10 = scalar_select 0, %s9, %s7
  $region1: #{tpu_custom_call.1} parent=0
    #allocation3 [shape = 'u8[16384]{0}', space=vmem, size = 0x4000, scoped, tag = 'input window, operand 0']
    #allocation4 [shape = 's32[2]{0}', space=sflag, size = 0x8, scoped, tag = 'scoped memory for tpu_custom_call.1']
    #allocation5 [shape = 's32[2]{0}', space=sflag, size = 0x8, scoped, tag = 'scoped memory for tpu_custom_call.1']
    #allocation6 [shape = 'u8[24576]{0}', space=vmem, size = 0x6000, scoped, tag = 'output window, operand 0']
    %11 = vsyncpa [#allocation4], 0
    %s12 = scalar_lea.sflag [#allocation4], 1
    %13 = vsyncpa %s12, 0
    %14 = vsyncpa [#allocation5], 0
    %s15 = scalar_lea.sflag [#allocation5], 1
    %16 = vsyncpa %s15, 0
    loop: start=0, step=1, limit=4
    $region2: #{tpu_custom_call.1} parent=1 // loop_pre_header
      _
    $region3: #{tpu_custom_call.1} parent=1 // loop_header
      %s18 = sphi 0, %s22
      %p19 = scmp.ge.s32.totalorder %s18, 4
      %s28 = sphi 0, %s30
      %s31 = sphi 0, %s28
      %s32 = sphi 0, %s31
      %s48 = sphi 0, %s32
      %s52 = sphi 0, %s52
      %s54 = sphi 0, %s52
      %s55 = sphi 0, %s54
      %s69 = sphi 0, %s55
      %s73 = sphi 0, %s73
      %s75 = sphi 0, %s73
      %s76 = sphi 0, %s75
      %s90 = sphi 0, %s76
      %s94 = sphi 0, %s94
      %s96 = sphi 0, %s94
      %s97 = sphi 0, %s96
      %s111 = sphi 0, %s97
      %s115 = sphi 0, %s115
      %s117 = sphi 0, %s115
      %s118 = sphi 0, %s117
      %s132 = sphi 0, %s118
      %s136 = sphi 0, %s136
      %s138 = sphi 0, %s136
      %s139 = sphi 0, %s138
      %s153 = sphi 0, %s139
      %s159 = sphi 0, %s161
      %s162 = sphi 0, %s159
      %s163 = sphi 0, %s162
      %s179 = sphi 0, %s163
    $region4: #{tpu_custom_call.1} parent=1 // loop_header_branch
      %21 = sbr.rel (%p19) target = $region8
    $region5: #{tpu_custom_call.1} parent=1 // loop_body
      %s23 = ssub.s32 %s18, 1
      %s24 = ssub.s32 %s18, 2
      %s25 = sadd.s32 %s18, 1
      %s26 = ssub.s32 %s18, %s25
      %p27 = scmp.eq.s32.totalorder %s26, 0
      %s29 = sadd.s32 %s28, 1
      %s30 = scalar_select %p27, %s28, %s29
      %p33 = pneg %p27
      %p34 = scmp.eq.s32.totalorder %s18, 1
      %p35 = por %p33, %p34
      %p36 = scmp.ne.s32.totalorder %s28, %s31
      %p37 = scmp.eq.s32.totalorder %s18, 0
      %p38 = por %p36, %p37
      %p39 = scmp.ne.s32.totalorder %s28, %s31
      %p40 = scmp.eq.s32.totalorder %s23, 1
      %p41 = por %p39, %p40
      %p42 = scmp.ne.s32.totalorder %s31, %s32
      %p43 = scmp.eq.s32.totalorder %s23, 0
      %p44 = por %p42, %p43
      %p45 = scmp.ne.s32.totalorder %s31, %s32
      %p46 = scmp.eq.s32.totalorder %s24, 1
      %p47 = por %p45, %p46
      %p49 = scmp.ne.s32.totalorder %s32, %s48
      %p50 = scmp.eq.s32.totalorder %s24, 0
      %p51 = por %p49, %p50
      %s53 = sadd.s32 %s52, 1
      %p56 = scmp.eq.s32.totalorder %s18, 1
      %p57 = scmp.ne.s32.totalorder %s52, %s54
      %p58 = scmp.eq.s32.totalorder %s18, 0
      %p59 = por %p57, %p58
      %p60 = scmp.ne.s32.totalorder %s52, %s54
      %p61 = scmp.eq.s32.totalorder %s23, 1
      %p62 = por %p60, %p61
      %p63 = scmp.ne.s32.totalorder %s54, %s55
      %p64 = scmp.eq.s32.totalorder %s23, 0
      %p65 = por %p63, %p64
      %p66 = scmp.ne.s32.totalorder %s54, %s55
      %p67 = scmp.eq.s32.totalorder %s24, 1
      %p68 = por %p66, %p67
      %p70 = scmp.ne.s32.totalorder %s55, %s69
      %p71 = scmp.eq.s32.totalorder %s24, 0
      %p72 = por %p70, %p71
      %s74 = sadd.s32 %s73, 1
      %p77 = scmp.eq.s32.totalorder %s18, 1
      %p78 = scmp.ne.s32.totalorder %s73, %s75
      %p79 = scmp.eq.s32.totalorder %s18, 0
      %p80 = por %p78, %p79
      %p81 = scmp.ne.s32.totalorder %s73, %s75
      %p82 = scmp.eq.s32.totalorder %s23, 1
      %p83 = por %p81, %p82
      %p84 = scmp.ne.s32.totalorder %s75, %s76
      %p85 = scmp.eq.s32.totalorder %s23, 0
      %p86 = por %p84, %p85
      %p87 = scmp.ne.s32.totalorder %s75, %s76
      %p88 = scmp.eq.s32.totalorder %s24, 1
      %p89 = por %p87, %p88
      %p91 = scmp.ne.s32.totalorder %s76, %s90
      %p92 = scmp.eq.s32.totalorder %s24, 0
      %p93 = por %p91, %p92
      %s95 = sadd.s32 %s94, 1
      %p98 = scmp.eq.s32.totalorder %s18, 1
      %p99 = scmp.ne.s32.totalorder %s94, %s96
      %p100 = scmp.eq.s32.totalorder %s18, 0
      %p101 = por %p99, %p100
      %p102 = scmp.ne.s32.totalorder %s94, %s96
      %p103 = scmp.eq.s32.totalorder %s23, 1
      %p104 = por %p102, %p103
      %p105 = scmp.ne.s32.totalorder %s96, %s97
      %p106 = scmp.eq.s32.totalorder %s23, 0
      %p107 = por %p105, %p106
      %p108 = scmp.ne.s32.totalorder %s96, %s97
      %p109 = scmp.eq.s32.totalorder %s24, 1
      %p110 = por %p108, %p109
      %p112 = scmp.ne.s32.totalorder %s97, %s111
      %p113 = scmp.eq.s32.totalorder %s24, 0
      %p114 = por %p112, %p113
      %s116 = sadd.s32 %s115, 1
      %p119 = scmp.eq.s32.totalorder %s18, 1
      %p120 = scmp.ne.s32.totalorder %s115, %s117
      %p121 = scmp.eq.s32.totalorder %s18, 0
      %p122 = por %p120, %p121
      %p123 = scmp.ne.s32.totalorder %s115, %s117
      %p124 = scmp.eq.s32.totalorder %s23, 1
      %p125 = por %p123, %p124
      %p126 = scmp.ne.s32.totalorder %s117, %s118
      %p127 = scmp.eq.s32.totalorder %s23, 0
      %p128 = por %p126, %p127
      %p129 = scmp.ne.s32.totalorder %s117, %s118
      %p130 = scmp.eq.s32.totalorder %s24, 1
      %p131 = por %p129, %p130
      %p133 = scmp.ne.s32.totalorder %s118, %s132
      %p134 = scmp.eq.s32.totalorder %s24, 0
      %p135 = por %p133, %p134
      %s137 = sadd.s32 %s136, 1
      %p140 = scmp.eq.s32.totalorder %s18, 1
      %p141 = scmp.ne.s32.totalorder %s136, %s138
      %p142 = scmp.eq.s32.totalorder %s18, 0
      %p143 = por %p141, %p142
      %p144 = scmp.ne.s32.totalorder %s136, %s138
      %p145 = scmp.eq.s32.totalorder %s23, 1
      %p146 = por %p144, %p145
      %p147 = scmp.ne.s32.totalorder %s138, %s139
      %p148 = scmp.eq.s32.totalorder %s23, 0
      %p149 = por %p147, %p148
      %p150 = scmp.ne.s32.totalorder %s138, %s139
      %p151 = scmp.eq.s32.totalorder %s24, 1
      %p152 = por %p150, %p151
      %p154 = scmp.ne.s32.totalorder %s139, %s153
      %p155 = scmp.eq.s32.totalorder %s24, 0
      %p156 = por %p154, %p155
      %s157 = ssub.s32 %s18, %s25
      %p158 = scmp.eq.s32.totalorder %s157, 0
      %s160 = sadd.s32 %s159, 1
      %s161 = scalar_select %p158, %s159, %s160
      %p164 = pneg %p158
      %p165 = scmp.eq.s32.totalorder %s18, 1
      %p166 = por %p164, %p165
      %p167 = scmp.ne.s32.totalorder %s159, %s162
      %p168 = scmp.eq.s32.totalorder %s18, 0
      %p169 = por %p167, %p168
      %p170 = scmp.ne.s32.totalorder %s159, %s162
      %p171 = scmp.eq.s32.totalorder %s23, 1
      %p172 = por %p170, %p171
      %p173 = scmp.ne.s32.totalorder %s162, %s163
      %p174 = scmp.eq.s32.totalorder %s23, 0
      %p175 = por %p173, %p174
      %p176 = scmp.ne.s32.totalorder %s162, %s163
      %p177 = scmp.eq.s32.totalorder %s24, 1
      %p178 = por %p176, %p177
      %p180 = scmp.ne.s32.totalorder %s163, %s179
      %p181 = scmp.eq.s32.totalorder %s24, 0
      %p182 = por %p180, %p181
      %p183 = scmp.le.s32.totalorder 1, %s18
      %p184 = scmp.lt.s32.totalorder %s18, 3
      %p185 = pnand %p183, %p184
      %p186 = pneg %p185
      // Predicated region
      $region9: #{tpu_custom_call.1} parent=5 // pred_check
        _
      $region10: #{tpu_custom_call.1} parent=5 // pred_check_branch
        %188 = sbr.rel (%p185) target = $region12
      $region11: #{tpu_custom_call.1} parent=5 // pred_region
        %s189 = ssub.s32 %s18, 1
        // Predicated region
        $region13: #{tpu_custom_call.1} parent=11 // pred_check
          %p190 = pneg %p65
        $region14: #{tpu_custom_call.1} parent=11 // pred_check_branch
          %192 = sbr.rel (%p190) target = $region16
        $region15: #{tpu_custom_call.1} parent=11 // pred_region
          _
        $region16: #{tpu_custom_call.1} parent=11 // pred_fallthru
          _
        // Predicated region
        $region17: #{tpu_custom_call.1} parent=11 // pred_check
          %p193 = pneg %p86
        $region18: #{tpu_custom_call.1} parent=11 // pred_check_branch
          %195 = sbr.rel (%p193) target = $region20
        $region19: #{tpu_custom_call.1} parent=11 // pred_region
          _
        $region20: #{tpu_custom_call.1} parent=11 // pred_fallthru
          _
        // Predicated region
        $region21: #{tpu_custom_call.1} parent=11 // pred_check
          %p196 = pneg %p107
        $region22: #{tpu_custom_call.1} parent=11 // pred_check_branch
          %198 = sbr.rel (%p196) target = $region24
        $region23: #{tpu_custom_call.1} parent=11 // pred_region
          _
        $region24: #{tpu_custom_call.1} parent=11 // pred_fallthru
          _
        // Predicated region
        $region25: #{tpu_custom_call.1} parent=11 // pred_check
          %p199 = pneg %p128
        $region26: #{tpu_custom_call.1} parent=11 // pred_check_branch
          %201 = sbr.rel (%p199) target = $region28
        $region27: #{tpu_custom_call.1} parent=11 // pred_region
          _
        $region28: #{tpu_custom_call.1} parent=11 // pred_fallthru
          _
        // Predicated region
        $region29: #{tpu_custom_call.1} parent=11 // pred_check
          %p202 = pneg %p149
        $region30: #{tpu_custom_call.1} parent=11 // pred_check_branch
          %204 = sbr.rel (%p202) target = $region32
        $region31: #{tpu_custom_call.1} parent=11 // pred_region
          _
        $region32: #{tpu_custom_call.1} parent=11 // pred_fallthru
          _
      $region12: #{tpu_custom_call.1} parent=5 // pred_fallthru
        _
      %p205 = scmp.lt.s32.totalorder %s18, 2
      // Predicated region
      $region33: #{tpu_custom_call.1} parent=5 // pred_check
        %p206 = pneg %p205
      $region34: #{tpu_custom_call.1} parent=5 // pred_check_branch
        %208 = sbr.rel (%p206) target = $region36
      $region35: #{tpu_custom_call.1} parent=5 // pred_region
        // Predicated region
        $region37: #{tpu_custom_call.1} parent=35 // pred_check
          %p209 = pneg %p38
        $region38: #{tpu_custom_call.1} parent=35 // pred_check_branch
          %211 = sbr.rel (%p209) target = $region40
        $region39: #{tpu_custom_call.1} parent=35 // pred_region
          %s212 = sand.u32 %s28, 1
          %s213 = scalar_lea.sflag [#allocation4], %s212
          %s214 = sand.u32 %s28, 1
          %s215 = smul.addr %s214, 16
          %s216 = scalar_lea.vmem [#allocation3], %s215
          %s218 = ssub.s32 256, 256
          %219 = vsyncadd %s213, %s218
          %s220 = smul.addr %s18, 2
          %s221 = smul.addr %s220, 128
          %s222 = scalar_lea.hbm %s0, %s221
          %s224 = sshll.u32 %s216, 4
          %s225 = int_to_ptr.vmem [resolvable:$true] %s224
          %227 = dma.hbm_to_vmem [thread:$0]  %s222, 256, %s225, %s213
        $region40: #{tpu_custom_call.1} parent=35 // pred_fallthru
          _
      $region36: #{tpu_custom_call.1} parent=5 // pred_fallthru
        _
      %p228 = scmp.le.s32.totalorder 1, %s18
      %p229 = scmp.lt.s32.totalorder %s18, 3
      %p230 = pnand %p228, %p229
      %p231 = pneg %p230
      // Predicated region
      $region41: #{tpu_custom_call.1} parent=5 // pred_check
        _
      $region42: #{tpu_custom_call.1} parent=5 // pred_check_branch
        %233 = sbr.rel (%p230) target = $region44
      $region43: #{tpu_custom_call.1} parent=5 // pred_region
        %s234 = ssub.s32 %s18, 1
        %s235 = sand.u32 %s31, 1
        %s236 = scalar_lea.sflag [#allocation4], %s235
        %s237 = sand.u32 %s31, 1
        %s238 = smul.addr %s237, 16
        %s239 = scalar_lea.vmem [#allocation3], %s238
        // Predicated region
        $region45: #{tpu_custom_call.1} parent=43 // pred_check
          %p240 = pneg %p44
        $region46: #{tpu_custom_call.1} parent=43 // pred_check_branch
          %242 = sbr.rel (%p240) target = $region48
        $region47: #{tpu_custom_call.1} parent=43 // pred_region
          %243 = dma.done %s236, 256
        $region48: #{tpu_custom_call.1} parent=43 // pred_fallthru
          _
        %s244 = sand.u32 %s31, 1
        %s245 = scalar_lea.sflag [#allocation4], %s244
        %s246 = sand.u32 %s31, 1
        %s247 = smul.addr %s246, 16
        %s248 = scalar_lea.vmem [#allocation3], %s247
        %p249 = pneg %p44
        %p250 = pneg %p41
        %p251 = pneg %p65
        %p252 = pneg %p62
        %p253 = pneg %p86
        %p254 = pneg %p83
        %p255 = pneg %p107
        %p256 = pneg %p104
        %p257 = pneg %p128
        %p258 = pneg %p125
        %p259 = pneg %p149
        %p260 = pneg %p146
        %p261 = pneg %p175
        %p262 = pneg %p172
        %s263 = sand.u32 %s162, 1
        %s264 = scalar_lea.sflag [#allocation5], %s263
        %s265 = sand.u32 %s162, 1
        %s266 = smul.addr %s265, 24
        %s267 = scalar_lea.vmem [#allocation6], %s266
        %v269 = vld [vmem:[%s5] sm:$0x7]
        %vm270 = vcmask 154624
        %271 = vst.msk [vmem:[#allocation2] sm:$0xff] %vm270, 0.0
        %v272 = vld [vmem:[%s239] sm:$0xff]
        %274 = vrot.lane.b32.xlu0 %v272, 19
        %v275 = vpop.permute.xlu0 %274
        %vm277 = vcmask 285848
        %278 = vst.msk [vmem:[#allocation2] sm:$0xff] %vm277, %v275
        %vm279 = vcmask 302360
        %280 = vst.msk [vmem:[#allocation2] sm:$0xff] %vm279, 0.0
        %v281 = vld [vmem:[%s239] sm:$0xff]
        %283 = vrot.lane.b32.xlu0 %v281, 21
        %v284 = vpop.permute.xlu0 %283
        %vm286 = vcmask 433448
        %287 = vst.msk [vmem:[#allocation2] sm:$0xff] %vm286, %v284
        %vm288 = vcmask 449960
        %289 = vst.msk [vmem:[#allocation2] sm:$0xff] %vm288, 0.0
        %v290 = vld [vmem:[%s239] sm:$0xff]
        %292 = vrot.lane.b32.xlu0 %v290, 23
        %v293 = vpop.permute.xlu0 %292
        %vm295 = vcmask 581048
        %296 = vst.msk [vmem:[#allocation2] sm:$0xff] %vm295, %v293
        %vm297 = vcmask 597560
        %298 = vst.msk [vmem:[#allocation2] sm:$0xff] %vm297, 0.0
        %v299 = vld [vmem:[%s239] sm:$0xff]
        %301 = vrot.lane.b32.xlu0 %v299, 25
        %v302 = vpop.permute.xlu0 %301
        %vm304 = vcmask 728648
        %305 = vst.msk [vmem:[#allocation2] sm:$0xff] %vm304, %v302
        %vm306 = vcmask 745160
        %307 = vst.msk [vmem:[#allocation2] sm:$0xff] %vm306, 0.0
        %v308 = vld [vmem:[%s239] sm:$0xff]
        %310 = vrot.lane.b32.xlu0 %v308, 27
        %v311 = vpop.permute.xlu0 %310
        %vm313 = vcmask 876248
        %314 = vst.msk [vmem:[#allocation2] sm:$0xff] %vm313, %v311
        %vm315 = vcmask 892760
        %316 = vst.msk [vmem:[#allocation2] sm:$0xff] %vm315, 0.0
        %v317 = vld [vmem:[%s239] sm:$0xff]
        %319 = vrot.lane.b32.xlu0 %v317, 29
        %v320 = vpop.permute.xlu0 %319
        %vm322 = vcmask 1023848
        %323 = vst.msk [vmem:[#allocation2] sm:$0xff] %vm322, %v320
        %vm324 = vcmask 1040360
        %325 = vst.msk [vmem:[#allocation2] sm:$0xff] %vm324, 0.0
        %v326 = vld [vmem:[%s239] sm:$0xff]
        %328 = vrot.lane.b32.xlu0 %v326, 31
        %v329 = vpop.permute.xlu0 %328
        %vm331 = vcmask 1048568
        %332 = vst.msk [vmem:[#allocation2] sm:$0xff] %vm331, %v329
        %vm333 = vcmask 121856
        %334 = vst.msk [vmem:[#allocation2 + $0x8] sm:$0xff] %vm333, %v329
        %vm335 = vcmask 138360
        %336 = vst.msk [vmem:[#allocation2 + $0x8] sm:$0xff] %vm335, 0.0
        %v337 = vld [vmem:[%s239] sm:$0xff]
        %339 = vrot.lane.b32.xlu0 %v337, 33
        %v340 = vpop.permute.xlu0 %339
        %vm342 = vcmask 269448
        %343 = vst.msk [vmem:[#allocation2 + $0x8] sm:$0xff] %vm342, %v340
        %vm344 = vcmask 285960
        %345 = vst.msk [vmem:[#allocation2 + $0x8] sm:$0xff] %vm344, 0.0
        %v346 = vld [vmem:[%s239 + $0x8] sm:$0xff]
        %348 = vrot.lane.b32.xlu0 %v346, 35
        %v349 = vpop.permute.xlu0 %348
        %vm351 = vcmask 417048
        %352 = vst.msk [vmem:[#allocation2 + $0x8] sm:$0xff] %vm351, %v349
        %vm353 = vcmask 433560
        %354 = vst.msk [vmem:[#allocation2 + $0x8] sm:$0xff] %vm353, 0.0
        %v355 = vld [vmem:[%s239 + $0x8] sm:$0xff]
        %357 = vrot.lane.b32.xlu0 %v355, 37
        %v358 = vpop.permute.xlu0 %357
        %vm360 = vcmask 564648
        %361 = vst.msk [vmem:[#allocation2 + $0x8] sm:$0xff] %vm360, %v358
        %vm362 = vcmask 581160
        %363 = vst.msk [vmem:[#allocation2 + $0x8] sm:$0xff] %vm362, 0.0
        %v364 = vld [vmem:[%s239 + $0x8] sm:$0xff]
        %366 = vrot.lane.b32.xlu0 %v364, 39
        %v367 = vpop.permute.xlu0 %366
        %vm369 = vcmask 712248
        %370 = vst.msk [vmem:[#allocation2 + $0x8] sm:$0xff] %vm369, %v367
        %vm371 = vcmask 728760
        %372 = vst.msk [vmem:[#allocation2 + $0x8] sm:$0xff] %vm371, 0.0
        %v373 = vld [vmem:[%s239 + $0x8] sm:$0xff]
        %375 = vrot.lane.b32.xlu0 %v373, 41
        %v376 = vpop.permute.xlu0 %375
        %vm378 = vcmask 859848
        %379 = vst.msk [vmem:[#allocation2 + $0x8] sm:$0xff] %vm378, %v376
        %vm380 = vcmask 876360
        %381 = vst.msk [vmem:[#allocation2 + $0x8] sm:$0xff] %vm380, 0.0
        %v382 = vld [vmem:[%s239 + $0x8] sm:$0xff]
        %384 = vrot.lane.b32.xlu0 %v382, 43
        %v385 = vpop.permute.xlu0 %384
        %vm387 = vcmask 1007448
        %388 = vst.msk [vmem:[#allocation2 + $0x8] sm:$0xff] %vm387, %v385
        %vm389 = vcmask 1023960
        %390 = vst.msk [vmem:[#allocation2 + $0x8] sm:$0xff] %vm389, 0.0
        %v391 = vld [vmem:[%s239 + $0x8] sm:$0xff]
        %393 = vrot.lane.b32.xlu0 %v391, 45
        %v394 = vpop.permute.xlu0 %393
        %vm396 = vcmask 1048552
        %397 = vst.msk [vmem:[#allocation2 + $0x8] sm:$0xff] %vm396, %v394
        %vm398 = vcmask 105472
        %399 = vst.msk [vmem:[#allocation2 + $0x10] sm:$0xff] %vm398, %v394
        %vm400 = vcmask 121960
        %401 = vst.msk [vmem:[#allocation2 + $0x10] sm:$0xff] %vm400, 0.0
        %v402 = vld [vmem:[%s239 + $0x8] sm:$0xff]
        %404 = vrot.lane.b32.xlu0 %v402, 47
        %v405 = vpop.permute.xlu0 %404
        %vm407 = vcmask 253048
        %408 = vst.msk [vmem:[#allocation2 + $0x10] sm:$0xff] %vm407, %v405
        %vm409 = vcmask 269560
        %410 = vst.msk [vmem:[#allocation2 + $0x10] sm:$0xff] %vm409, 0.0
        %v411 = vld [vmem:[%s239 + $0x8] sm:$0xff]
        %413 = vrot.lane.b32.xlu0 %v411, 49
        %v414 = vpop.permute.xlu0 %413
        %vm416 = vcmask 400648
        %417 = vst.msk [vmem:[#allocation2 + $0x10] sm:$0xff] %vm416, %v414
        %vm418 = vcmask 703880
        %419 = vst.msk [vmem:[#allocation2 + $0x10] sm:$0xff] %vm418, 0.0
        %v420 = vld [vmem:[#allocation2] sm:$0xff]
        %v421 = vld [vmem:[#allocation2 + $0x8] sm:$0xff]
        %v422 = vld [vmem:[#allocation2 + $0x10] sm:$0xff]
        %v423 = vld [vmem:[%s1] sm:$0xf]
        %v424 = vld [vmem:[%s2] sm:$0xff]
        %428 = vrot.lane.b32.xlu0 %v420, 127
        %v429 = vpop.permute.xlu0 %428
        %430 = vrot.lane.b32.xlu0 %v421, 127
        %v431 = vpop.permute.xlu0 %430
        %432 = vrot.lane.b32.xlu0 %v422, 127
        %v433 = vpop.permute.xlu0 %432
        %vm434 = vcmask 1039360
        %v435 = vsel %vm434, %v429, %v431
        %v436 = vsel %vm434, %v431, %v433
        %440 = vrot.lane.b32.xlu0 %v420, 126
        %v441 = vpop.permute.xlu0 %440
        %442 = vrot.lane.b32.xlu0 %v421, 126
        %v443 = vpop.permute.xlu0 %442
        %444 = vrot.lane.b32.xlu0 %v422, 126
        %v445 = vpop.permute.xlu0 %444
        %vm446 = vcmask 1031168
        %v447 = vsel %vm446, %v441, %v443
        %v448 = vsel %vm446, %v443, %v445
        %452 = vrot.lane.b32.xlu0 %v420, 110
        %v453 = vpop.permute.xlu0 %452
        %454 = vrot.lane.b32.xlu0 %v421, 110
        %v455 = vpop.permute.xlu0 %454
        %456 = vrot.lane.b32.xlu0 %v422, 110
        %v457 = vpop.permute.xlu0 %456
        %vm458 = vcmask 900096
        %v459 = vsel %vm458, %v453, %v455
        %v460 = vsel %vm458, %v455, %v457
        %464 = vrot.lane.b32.xlu0 %v420, 109
        %v465 = vpop.permute.xlu0 %464
        %466 = vrot.lane.b32.xlu0 %v421, 109
        %v467 = vpop.permute.xlu0 %466
        %468 = vrot.lane.b32.xlu0 %v422, 109
        %v469 = vpop.permute.xlu0 %468
        %vm470 = vcmask 891904
        %v471 = vsel %vm470, %v465, %v467
        %v472 = vsel %vm470, %v467, %v469
        %476 = vrot.lane.b32.xlu0 %v420, 108
        %v477 = vpop.permute.xlu0 %476
        %478 = vrot.lane.b32.xlu0 %v421, 108
        %v479 = vpop.permute.xlu0 %478
        %480 = vrot.lane.b32.xlu0 %v422, 108
        %v481 = vpop.permute.xlu0 %480
        %vm482 = vcmask 883712
        %v483 = vsel %vm482, %v477, %v479
        %v484 = vsel %vm482, %v479, %v481
        %488 = vrot.lane.b32.xlu0 %v420, 92
        %v489 = vpop.permute.xlu0 %488
        %490 = vrot.lane.b32.xlu0 %v421, 92
        %v491 = vpop.permute.xlu0 %490
        %492 = vrot.lane.b32.xlu0 %v422, 92
        %v493 = vpop.permute.xlu0 %492
        %vm494 = vcmask 752640
        %v495 = vsel %vm494, %v489, %v491
        %v496 = vsel %vm494, %v491, %v493
        %500 = vrot.lane.b32.xlu0 %v420, 91
        %v501 = vpop.permute.xlu0 %500
        %502 = vrot.lane.b32.xlu0 %v421, 91
        %v503 = vpop.permute.xlu0 %502
        %504 = vrot.lane.b32.xlu0 %v422, 91
        %v505 = vpop.permute.xlu0 %504
        %vm506 = vcmask 744448
        %v507 = vsel %vm506, %v501, %v503
        %v508 = vsel %vm506, %v503, %v505
        %512 = vrot.lane.b32.xlu0 %v420, 90
        %v513 = vpop.permute.xlu0 %512
        %514 = vrot.lane.b32.xlu0 %v421, 90
        %v515 = vpop.permute.xlu0 %514
        %516 = vrot.lane.b32.xlu0 %v422, 90
        %v517 = vpop.permute.xlu0 %516
        %vm518 = vcmask 736256
        %v519 = vsel %vm518, %v513, %v515
        %v520 = vsel %vm518, %v515, %v517
        %v524 = vpack.c.bf16 %v435, %v420
        %v525 = vpack.c.bf16 %v436, %v421
        %v526 = vpack.c.bf16 %v433, %v422
        %v527 = vpack.c.bf16 %v459, %v447
        %v528 = vpack.c.bf16 %v460, %v448
        %v529 = vpack.c.bf16 %v457, %v445
        %v530 = vpack.c.bf16 %v483, %v471
        %v531 = vpack.c.bf16 %v484, %v472
        %v532 = vpack.c.bf16 %v481, %v469
        %v533 = vpack.c.bf16 %v507, %v495
        %v534 = vpack.c.bf16 %v508, %v496
        %v535 = vpack.c.bf16 %v505, %v493
        %v536 = vpack.c.bf16 %v519, %v519
        %v537 = vpack.c.bf16 %v520, %v520
        %v538 = vpack.c.bf16 %v517, %v517
        %540 = vset.pattern.permute.xlu0 0
        %541 = vperm.xlu0 %540, %v424
        %v542 = vpop.permute.xlu0 %541
        %vm544 = vcmask 588800
        %v546 = vsel %vm544, %v423, 0
        %vm548 = vcmask 1043456
        %v550 = vsel %vm548, %v536, 0
        %v553 = vsel %vm548, %v537, 0
        %v556 = vsel %vm548, %v538, 0
        %558 = vmatprep.subr.bf16.mxu0 %v525
        %559 = vmatpush1.bf16.msra.mxu0 %v524
        %560 = vmatprep.subr.bf16.mxu0 %v528
        %561 = vmatpush1.bf16.msra.mxu0 %v527
        %562 = vmatprep.subr.bf16.mxu0 %v531
        %563 = vmatpush1.bf16.msra.mxu0 %v530
        %564 = vmatprep.subr.bf16.mxu0 %v534
        %565 = vmatpush1.bf16.msra.mxu0 %v533
        %566 = vmatprep.subr.bf16.mxu0 %v553
        %567 = vmatpush1.bf16.msra.mxu0 %v550
        %568 = vmatprep.subr.bf16.mxu0 0
        %569 = vmatpush1.bf16.msra.mxu0 0
        %570 = vmatprep.subr.bf16.mxu0 0
        %571 = vmatpush1.bf16.msra.mxu0 0
        %572 = vmatprep.subr.bf16.mxu0 0
        %573 = vmatpush1.bf16.msra.mxu0 0
        %574 = vmatprep.subr.bf16.mxu0 0
        %575 = vmatpush1.bf16.msra.mxu0 0
        %576 = vmatprep.subr.bf16.mxu0 0
        %577 = vmatpush1.bf16.msra.mxu0 0
        %578 = vmatprep.subr.bf16.mxu0 0
        %579 = vmatpush1.bf16.msra.mxu0 0
        %580 = vmatprep.subr.bf16.mxu0 0
        %581 = vmatpush1.bf16.msra.mxu0 0
        %582 = vmatprep.subr.bf16.mxu0 0
        %583 = vmatpush1.bf16.msra.mxu0 0
        %584 = vmatprep.subr.bf16.mxu0 0
        %585 = vmatpush1.bf16.msra.mxu0 0
        %586 = vmatprep.subr.bf16.mxu0 0
        %587 = vmatpush1.bf16.msra.mxu0 0
        %588 = vmatprep.subr.bf16.mxu0 0
        %589 = vmatpush1.bf16.msra.mxu0 0
        %590 = vmatprep.mubr.bf16.mxu0 0
        %591 = vmatmul.mubr.bf16.gmra.mrb[0].mxu0 %v546
        %v592 = vpop.f32.mrb[0].mxu0
        %v593 = vadd.f32 %v542, %v592
        %v594 = vpop.f32.mrb[0].mxu0
        %v595 = vadd.f32 %v542, %v594
        %v596 = vpop.f32.mrb[0].mxu0
        %v597 = vpop.f32.mrb[0].mxu0
        %598 = vdwg.mxu0
        %599 = vmatprep.subr.bf16.mxu0 0
        %600 = vmatpush1.bf16.msra.mxu0 %v526
        %601 = vmatprep.subr.bf16.mxu0 0
        %602 = vmatpush1.bf16.msra.mxu0 %v529
        %603 = vmatprep.subr.bf16.mxu0 0
        %604 = vmatpush1.bf16.msra.mxu0 %v532
        %605 = vmatprep.subr.bf16.mxu0 0
        %606 = vmatpush1.bf16.msra.mxu0 %v535
        %607 = vmatprep.subr.bf16.mxu0 0
        %608 = vmatpush1.bf16.msra.mxu0 %v556
        %609 = vmatprep.subr.bf16.mxu0 0
        %610 = vmatpush1.bf16.msra.mxu0 0
        %611 = vmatprep.subr.bf16.mxu0 0
        %612 = vmatpush1.bf16.msra.mxu0 0
        %613 = vmatprep.subr.bf16.mxu0 0
        %614 = vmatpush1.bf16.msra.mxu0 0
        %615 = vmatprep.subr.bf16.mxu0 0
        %616 = vmatpush1.bf16.msra.mxu0 0
        %617 = vmatprep.subr.bf16.mxu0 0
        %618 = vmatpush1.bf16.msra.mxu0 0
        %619 = vmatprep.subr.bf16.mxu0 0
        %620 = vmatpush1.bf16.msra.mxu0 0
        %621 = vmatprep.subr.bf16.mxu0 0
        %622 = vmatpush1.bf16.msra.mxu0 0
        %623 = vmatprep.subr.bf16.mxu0 0
        %624 = vmatpush1.bf16.msra.mxu0 0
        %625 = vmatprep.subr.bf16.mxu0 0
        %626 = vmatpush1.bf16.msra.mxu0 0
        %627 = vmatprep.subr.bf16.mxu0 0
        %628 = vmatpush1.bf16.msra.mxu0 0
        %629 = vmatprep.subr.bf16.mxu0 0
        %630 = vmatpush1.bf16.msra.mxu0 0
        %631 = vmatprep.mubr.bf16.mxu0 0
        %632 = vmatmul.mubr.bf16.gmra.mrb[0].mxu0 %v546
        %v633 = vpop.f32.mrb[0].mxu0
        %v634 = vadd.f32 %v542, %v633
        %v635 = vpop.f32.mrb[0].mxu0
        %v636 = vpop.f32.mrb[0].mxu0
        %v637 = vpop.f32.mrb[0].mxu0
        %638 = vdwg.mxu0
        %v639 = vmax.f32 %v593, 0.0
        %v640 = vmax.f32 %v595, 0.0
        %v641 = vmax.f32 %v634, 0.0
        %v643 = vlaneseq
        %v644 = vshrl.u32 %v643, 7
        %v645 = vsub.s32 0, %v644
        %v646 = vrot.slane %v269, %v645
        %v647 = vlaneseq
        %v648 = vshrl.u32 %v647, 7
        %v649 = vsub.s32 1, %v648
        %v650 = vrot.slane %v269, %v649
        %v651 = vlaneseq
        %v652 = vshrl.u32 %v651, 7
        %v653 = vsub.s32 2, %v652
        %v654 = vrot.slane %v269, %v653
        %v658 = vmul.f32 %v639, %v646
        %v659 = vmul.f32 %v640, %v650
        %v660 = vmul.f32 %v641, %v654
        %664 = vrot.lane.b32.xlu0 %v658, 19
        %v665 = vpop.permute.xlu0 %664
        %666 = vrot.lane.b32.xlu0 %v659, 19
        %v667 = vpop.permute.xlu0 %666
        %668 = vrot.lane.b32.xlu0 %v660, 19
        %v669 = vpop.permute.xlu0 %668
        %v670 = vsel %vm270, %v665, %v667
        %v671 = vsel %vm270, %v667, %v669
        %vm675 = vcmask 1047704
        %676 = vst.msk [vmem:[#allocation2] sm:$0xff] %vm675, %v665
        %677 = vst [vmem:[#allocation2 + $0x8] sm:$0xff] %v670
        %vm678 = vcmask 416768
        %679 = vst.msk [vmem:[#allocation2 + $0x10] sm:$0xff] %vm678, %v671
        %v680 = vld [vmem:[#allocation2] sm:$0xff]
        %v681 = vld [vmem:[#allocation2 + $0x8] sm:$0xff]
        %v682 = vld [vmem:[#allocation2 + $0x10] sm:$0xff]
        %v683 = vld [vmem:[%s3] sm:$0xf]
        %v684 = vld [vmem:[%s4] sm:$0xff]
        %688 = vrot.lane.b32.xlu0 %v680, 127
        %v689 = vpop.permute.xlu0 %688
        %690 = vrot.lane.b32.xlu0 %v681, 127
        %v691 = vpop.permute.xlu0 %690
        %692 = vrot.lane.b32.xlu0 %v682, 127
        %v693 = vpop.permute.xlu0 %692
        %v694 = vsel %vm434, %v689, %v691
        %v695 = vsel %vm434, %v691, %v693
        %699 = vrot.lane.b32.xlu0 %v680, 126
        %v700 = vpop.permute.xlu0 %699
        %701 = vrot.lane.b32.xlu0 %v681, 126
        %v702 = vpop.permute.xlu0 %701
        %703 = vrot.lane.b32.xlu0 %v682, 126
        %v704 = vpop.permute.xlu0 %703
        %v705 = vsel %vm446, %v700, %v702
        %v706 = vsel %vm446, %v702, %v704
        %710 = vrot.lane.b32.xlu0 %v680, 110
        %v711 = vpop.permute.xlu0 %710
        %712 = vrot.lane.b32.xlu0 %v681, 110
        %v713 = vpop.permute.xlu0 %712
        %714 = vrot.lane.b32.xlu0 %v682, 110
        %v715 = vpop.permute.xlu0 %714
        %v716 = vsel %vm458, %v711, %v713
        %v717 = vsel %vm458, %v713, %v715
        %721 = vrot.lane.b32.xlu0 %v680, 109
        %v722 = vpop.permute.xlu0 %721
        %723 = vrot.lane.b32.xlu0 %v681, 109
        %v724 = vpop.permute.xlu0 %723
        %725 = vrot.lane.b32.xlu0 %v682, 109
        %v726 = vpop.permute.xlu0 %725
        %v727 = vsel %vm470, %v722, %v724
        %v728 = vsel %vm470, %v724, %v726
        %732 = vrot.lane.b32.xlu0 %v680, 108
        %v733 = vpop.permute.xlu0 %732
        %734 = vrot.lane.b32.xlu0 %v681, 108
        %v735 = vpop.permute.xlu0 %734
        %736 = vrot.lane.b32.xlu0 %v682, 108
        %v737 = vpop.permute.xlu0 %736
        %v738 = vsel %vm482, %v733, %v735
        %v739 = vsel %vm482, %v735, %v737
        %743 = vrot.lane.b32.xlu0 %v680, 92
        %v744 = vpop.permute.xlu0 %743
        %745 = vrot.lane.b32.xlu0 %v681, 92
        %v746 = vpop.permute.xlu0 %745
        %747 = vrot.lane.b32.xlu0 %v682, 92
        %v748 = vpop.permute.xlu0 %747
        %v749 = vsel %vm494, %v744, %v746
        %v750 = vsel %vm494, %v746, %v748
        %754 = vrot.lane.b32.xlu0 %v680, 91
        %v755 = vpop.permute.xlu0 %754
        %756 = vrot.lane.b32.xlu0 %v681, 91
        %v757 = vpop.permute.xlu0 %756
        %758 = vrot.lane.b32.xlu0 %v682, 91
        %v759 = vpop.permute.xlu0 %758
        %v760 = vsel %vm506, %v755, %v757
        %v761 = vsel %vm506, %v757, %v759
        %765 = vrot.lane.b32.xlu0 %v680, 90
        %v766 = vpop.permute.xlu0 %765
        %767 = vrot.lane.b32.xlu0 %v681, 90
        %v768 = vpop.permute.xlu0 %767
        %769 = vrot.lane.b32.xlu0 %v682, 90
        %v770 = vpop.permute.xlu0 %769
        %v771 = vsel %vm518, %v766, %v768
        %v772 = vsel %vm518, %v768, %v770
        %v776 = vpack.c.bf16 %v694, %v680
        %v777 = vpack.c.bf16 %v695, %v681
        %v778 = vpack.c.bf16 %v693, %v682
        %v779 = vpack.c.bf16 %v716, %v705
        %v780 = vpack.c.bf16 %v717, %v706
        %v781 = vpack.c.bf16 %v715, %v704
        %v782 = vpack.c.bf16 %v738, %v727
        %v783 = vpack.c.bf16 %v739, %v728
        %v784 = vpack.c.bf16 %v737, %v726
        %v785 = vpack.c.bf16 %v760, %v749
        %v786 = vpack.c.bf16 %v761, %v750
        %v787 = vpack.c.bf16 %v759, %v748
        %v788 = vpack.c.bf16 %v771, %v771
        %v789 = vpack.c.bf16 %v772, %v772
        %v790 = vpack.c.bf16 %v770, %v770
        %792 = vset.pattern.permute.xlu0 0
        %793 = vperm.xlu0 %792, %v684
        %v794 = vpop.permute.xlu0 %793
        %v797 = vsel %vm544, %v683, 0
        %v800 = vsel %vm548, %v788, 0
        %v803 = vsel %vm548, %v789, 0
        %v806 = vsel %vm548, %v790, 0
        %808 = vmatprep.subr.bf16.mxu0 %v777
        %809 = vmatpush1.bf16.msra.mxu0 %v776
        %810 = vmatprep.subr.bf16.mxu0 %v780
        %811 = vmatpush1.bf16.msra.mxu0 %v779
        %812 = vmatprep.subr.bf16.mxu0 %v783
        %813 = vmatpush1.bf16.msra.mxu0 %v782
        %814 = vmatprep.subr.bf16.mxu0 %v786
        %815 = vmatpush1.bf16.msra.mxu0 %v785
        %816 = vmatprep.subr.bf16.mxu0 %v803
        %817 = vmatpush1.bf16.msra.mxu0 %v800
        %818 = vmatprep.subr.bf16.mxu0 0
        %819 = vmatpush1.bf16.msra.mxu0 0
        %820 = vmatprep.subr.bf16.mxu0 0
        %821 = vmatpush1.bf16.msra.mxu0 0
        %822 = vmatprep.subr.bf16.mxu0 0
        %823 = vmatpush1.bf16.msra.mxu0 0
        %824 = vmatprep.subr.bf16.mxu0 0
        %825 = vmatpush1.bf16.msra.mxu0 0
        %826 = vmatprep.subr.bf16.mxu0 0
        %827 = vmatpush1.bf16.msra.mxu0 0
        %828 = vmatprep.subr.bf16.mxu0 0
        %829 = vmatpush1.bf16.msra.mxu0 0
        %830 = vmatprep.subr.bf16.mxu0 0
        %831 = vmatpush1.bf16.msra.mxu0 0
        %832 = vmatprep.subr.bf16.mxu0 0
        %833 = vmatpush1.bf16.msra.mxu0 0
        %834 = vmatprep.subr.bf16.mxu0 0
        %835 = vmatpush1.bf16.msra.mxu0 0
        %836 = vmatprep.subr.bf16.mxu0 0
        %837 = vmatpush1.bf16.msra.mxu0 0
        %838 = vmatprep.subr.bf16.mxu0 0
        %839 = vmatpush1.bf16.msra.mxu0 0
        %840 = vmatprep.mubr.bf16.mxu0 0
        %841 = vmatmul.mubr.bf16.gmra.mrb[0].mxu0 %v797
        %v842 = vpop.f32.mrb[0].mxu0
        %v843 = vadd.f32 %v794, %v842
        %v844 = vpop.f32.mrb[0].mxu0
        %v845 = vadd.f32 %v794, %v844
        %v846 = vpop.f32.mrb[0].mxu0
        %v847 = vpop.f32.mrb[0].mxu0
        %848 = vdwg.mxu0
        %849 = vmatprep.subr.bf16.mxu0 0
        %850 = vmatpush1.bf16.msra.mxu0 %v778
        %851 = vmatprep.subr.bf16.mxu0 0
        %852 = vmatpush1.bf16.msra.mxu0 %v781
        %853 = vmatprep.subr.bf16.mxu0 0
        %854 = vmatpush1.bf16.msra.mxu0 %v784
        %855 = vmatprep.subr.bf16.mxu0 0
        %856 = vmatpush1.bf16.msra.mxu0 %v787
        %857 = vmatprep.subr.bf16.mxu0 0
        %858 = vmatpush1.bf16.msra.mxu0 %v806
        %859 = vmatprep.subr.bf16.mxu0 0
        %860 = vmatpush1.bf16.msra.mxu0 0
        %861 = vmatprep.subr.bf16.mxu0 0
        %862 = vmatpush1.bf16.msra.mxu0 0
        %863 = vmatprep.subr.bf16.mxu0 0
        %864 = vmatpush1.bf16.msra.mxu0 0
        %865 = vmatprep.subr.bf16.mxu0 0
        %866 = vmatpush1.bf16.msra.mxu0 0
        %867 = vmatprep.subr.bf16.mxu0 0
        %868 = vmatpush1.bf16.msra.mxu0 0
        %869 = vmatprep.subr.bf16.mxu0 0
        %870 = vmatpush1.bf16.msra.mxu0 0
        %871 = vmatprep.subr.bf16.mxu0 0
        %872 = vmatpush1.bf16.msra.mxu0 0
        %873 = vmatprep.subr.bf16.mxu0 0
        %874 = vmatpush1.bf16.msra.mxu0 0
        %875 = vmatprep.subr.bf16.mxu0 0
        %876 = vmatpush1.bf16.msra.mxu0 0
        %877 = vmatprep.subr.bf16.mxu0 0
        %878 = vmatpush1.bf16.msra.mxu0 0
        %879 = vmatprep.subr.bf16.mxu0 0
        %880 = vmatpush1.bf16.msra.mxu0 0
        %881 = vmatprep.mubr.bf16.mxu0 0
        %882 = vmatmul.mubr.bf16.gmra.mrb[0].mxu0 %v797
        %v883 = vpop.f32.mrb[0].mxu0
        %v884 = vadd.f32 %v794, %v883
        %v885 = vpop.f32.mrb[0].mxu0
        %v886 = vpop.f32.mrb[0].mxu0
        %v887 = vpop.f32.mrb[0].mxu0
        %888 = vdwg.mxu0
        %v889 = vadd.f32 %v843, %v471
        %v890 = vadd.f32 %v845, %v472
        %v891 = vadd.f32 %v884, %v469
        %892 = vst [vmem:[%s267] sm:$0xff] %v889
        %893 = vst [vmem:[%s267 + $0x8] sm:$0xff] %v890
        %vm894 = vcmask 261120
        %895 = vst.msk [vmem:[%s267 + $0x10] sm:$0xff] %vm894, %v891
        %s896 = sand.u32 %s162, 1
        %s897 = scalar_lea.sflag [#allocation5], %s896
        %s898 = sand.u32 %s162, 1
        %s899 = smul.addr %s898, 24
        %s900 = scalar_lea.vmem [#allocation6], %s899
        // Predicated region
        $region49: #{tpu_custom_call.1} parent=43 // pred_check
          %p901 = pneg %p172
        $region50: #{tpu_custom_call.1} parent=43 // pred_check_branch
          %903 = sbr.rel (%p901) target = $region52
        $region51: #{tpu_custom_call.1} parent=43 // pred_region
          %s905 = ssub.s32 384, 384
          %906 = vsyncadd %s897, %s905
          %s907 = smul.addr %s23, 3
          %s908 = smul.addr %s907, 128
          %s909 = scalar_lea.hbm %s6, %s908
          %s911 = sshll.u32 %s900, 4
          %s912 = int_to_ptr.vmem [resolvable:$true] %s911
          %914 = dma.vmem_to_hbm [thread:$0]  %s912, 384, %s909, %s897
        $region52: #{tpu_custom_call.1} parent=43 // pred_fallthru
          _
      $region44: #{tpu_custom_call.1} parent=5 // pred_fallthru
        _
      %p915 = scmp.le.s32.totalorder 2, %s18
      // Predicated region
      $region53: #{tpu_custom_call.1} parent=5 // pred_check
        %p916 = pneg %p915
      $region54: #{tpu_custom_call.1} parent=5 // pred_check_branch
        %918 = sbr.rel (%p916) target = $region56
      $region55: #{tpu_custom_call.1} parent=5 // pred_region
        %s919 = ssub.s32 %s18, 2
        // Predicated region
        $region57: #{tpu_custom_call.1} parent=55 // pred_check
          %p920 = pneg %p178
        $region58: #{tpu_custom_call.1} parent=55 // pred_check_branch
          %922 = sbr.rel (%p920) target = $region60
        $region59: #{tpu_custom_call.1} parent=55 // pred_region
          %s923 = sand.u32 %s163, 1
          %s924 = scalar_lea.sflag [#allocation5], %s923
          %s925 = sand.u32 %s163, 1
          %s926 = smul.addr %s925, 24
          %s927 = scalar_lea.vmem [#allocation6], %s926
          %928 = dma.done %s924, 384
        $region60: #{tpu_custom_call.1} parent=55 // pred_fallthru
          _
      $region56: #{tpu_custom_call.1} parent=5 // pred_fallthru
        _
    $region6: #{tpu_custom_call.1} parent=1 // loop_footer
      %s22 = sadd.s32 1, %s18
    $region7: #{tpu_custom_call.1} parent=1 // loop_footer_branch
      %17 = sbr.rel target = $region3
    $region8: #{tpu_custom_call.1} parent=1 // loop_exit
      _
    %929 = vsyncpa [#allocation4], 1
    %s930 = scalar_lea.sflag [#allocation4], 1
    %931 = vsyncpa %s930, 1
    %932 = vsyncpa [#allocation5], 1
    %s933 = scalar_lea.sflag [#allocation5], 1
    %934 = vsyncpa %s933, 1

</llo_original>
